<compile_context>
chip_gen: v7x
topology: tpu7x:2x2x1
jax: 0.10.0
libtpu: 0.0.40
codegen_flags: <defaults>
</compile_context>

<pallas_src>
import math

import jax
import jax.numpy as jnp
import numpy as np
from jax.experimental import pallas as pl
from jax.experimental.pallas import tpu as pltpu

LANES = 128
SUBLANES = 8
MAX_ROW_TILE = 4096                  # (4096, 128) f32 = 2 MiB per input per buffer
VMEM_LIMIT_BYTES = 32 * 1024 * 1024  # explicit headroom on every generation


def _make_kernel(row_tile):
    folds = row_tile // SUBLANES

    def kernel(state_ref, input_ref, ssum_ref, cnt_ref):
        # Zero this shard's resident (8, 128) partial accumulators once.
        @pl.when(pl.program_id(1) == 0)
        def _():
            ssum_ref[...] = jnp.zeros_like(ssum_ref)
            cnt_ref[...] = jnp.zeros_like(cnt_ref)

        x = input_ref[...]
        s = state_ref[...].astype(jnp.float32)

        finite = jnp.isfinite(x)
        # Select does not propagate NaN/Inf from the unselected branch, so no
        # explicit nan_to_num is needed.
        diff = jnp.where(finite, s - x.astype(jnp.float32), 0.0)
        sq = diff * diff
        cntf = finite.astype(jnp.float32)

        # Fold (row_tile, 128) -> (8, 128): pure VPU element-wise adds (the
        # reshape only splits the sublane-major axis, no relayout).
        ssum_ref[...] += jnp.sum(sq.reshape(folds, SUBLANES, LANES), axis=0)
        cnt_ref[...] += jnp.sum(cntf.reshape(folds, SUBLANES, LANES), axis=0)

    return kernel


def _masked_sq_sum_and_count(s, x):
    """Pure-JAX partial reduction (small tails / tiny inputs only)."""
    msk = jnp.isfinite(x)
    diff = jnp.where(msk, s.astype(jnp.float32) - x.astype(jnp.float32), 0.0)
    return jnp.sum(diff * diff), jnp.sum(msk.astype(jnp.float32))


def base_obs_cost(state, batch_input, w=1.0):
    """w * F.mse_loss(state[msk], nan_to_num(input)[msk]), msk = isfinite(input)."""
    assert state.shape == batch_input.shape
    n = math.prod(state.shape)

    s_flat = jnp.ravel(state)
    x_flat = jnp.ravel(batch_input)

    rows_total = n // LANES
    rows_aligned = (rows_total // SUBLANES) * SUBLANES

    if rows_aligned == 0:
        # < 1024 elements: launch overhead dominates; pure-JAX path.
        ssum, cnt = _masked_sq_sum_and_count(s_flat, x_flat)
        return (w * ssum / cnt).astype(jnp.float32)

    # Balanced block count: every grid step reads one full (row_tile, 128)
    # block of real data (no in-kernel masking, no overrun re-reads).  Bump to
    # an even count so the row axis splits exactly 2-way across TensorCores on
    # megacore parts (v7x).
    num_blocks = -(-rows_aligned // MAX_ROW_TILE)          # ceil
    if num_blocks > 1 and num_blocks % 2:
        num_blocks += 1
    row_tile = max(SUBLANES, ((rows_aligned // num_blocks) // SUBLANES) * SUBLANES)
    rows_big = num_blocks * row_tile                       # <= rows_aligned <= rows_total

    nc = 2 if num_blocks % 2 == 0 else 1
    steps = num_blocks // nc

    if n % LANES == 0:
        # Free (layout-preserving) reshape to a lane-dense slab; no copy, no pad.
        s2d = s_flat.reshape(rows_total, LANES)
        x2d = x_flat.reshape(rows_total, LANES)
    else:
        # Lane-ragged size: XLA materializes the prefix slice (unavoidable to
        # get a 2-D view); only the kernel-covered prefix is copied.
        m = rows_big * LANES
        s2d = s_flat[:m].reshape(rows_big, LANES)
        x2d = x_flat[:m].reshape(rows_big, LANES)

    def in_map(c, i):
        return (c * steps + i, 0)

    def out_map(c, i):
        return (c, 0)

    kernel = _make_kernel(row_tile)
    n_kern = rows_big * LANES
    cost = pl.CostEstimate(
        flops=7 * n_kern,
        transcendentals=0,
        bytes_accessed=n_kern * (s2d.dtype.itemsize + x2d.dtype.itemsize)
        + 2 * nc * SUBLANES * LANES * 4,
    )

    ssum_p, cnt_p = pl.pallas_call(
        kernel,
        out_shape=(
            jax.ShapeDtypeStruct((nc * SUBLANES, LANES), jnp.float32),
            jax.ShapeDtypeStruct((nc * SUBLANES, LANES), jnp.float32),
        ),
        grid_spec=pltpu.PrefetchScalarGridSpec(
            num_scalar_prefetch=0,
            grid=(nc, steps),
            in_specs=[
                pl.BlockSpec((row_tile, LANES), in_map),
                pl.BlockSpec((row_tile, LANES), in_map),
            ],
            out_specs=(
                pl.BlockSpec((SUBLANES, LANES), out_map),
                pl.BlockSpec((SUBLANES, LANES), out_map),
            ),
        ),
        compiler_params=pltpu.CompilerParams(
            dimension_semantics=("parallel", "arbitrary"),
            vmem_limit_bytes=VMEM_LIMIT_BYTES,
        ),
        cost_estimate=cost,
    )(s2d, x2d)

    ssum = jnp.sum(ssum_p)
    cnt = jnp.sum(cnt_p)

    # Remainder rows (a handful per block-rounding) + lane-unaligned tail
    # (< 128 elems): tiny, folded with plain JAX -> no full-array pad pass.
    tail_start = rows_big * LANES
    if tail_start < n:
        t_ssum, t_cnt = _masked_sq_sum_and_count(s_flat[tail_start:], x_flat[tail_start:])
        ssum = ssum + t_ssum
        cnt = cnt + t_cnt

    # NOTE: single-level f32 accumulation (each lane sums O(rows / (8*nc))
    # terms); fine at these sizes.  cnt == 0 yields NaN, matching PyTorch.
    # TODO(synk): optional in-kernel final reduce to SMEM scalars for tiny
    # inputs (saves one follow-up XLA reduce); skipped for simplicity.
    return (w * ssum / cnt).astype(jnp.float32)


def _reference(state, batch_input, w):
    msk = jnp.isfinite(batch_input)
    x_clean = jnp.nan_to_num(batch_input)
    diff = jnp.where(msk, state.astype(jnp.float32) - x_clean.astype(jnp.float32), 0.0)
    return w * jnp.sum(diff * diff) / jnp.sum(msk.astype(jnp.float32))


def _run_case(key, shape, w=1.0):
    k1, k2, k3 = jax.random.split(key, 3)
    state = jax.random.normal(k1, shape, dtype=jnp.float32)
    x = jax.random.normal(k2, shape, dtype=jnp.float32)
    nan_mask = jax.random.uniform(k3, shape) < 0.15
    x = jnp.where(nan_mask, jnp.nan, x)
    x = x.reshape(-1).at[:4].set(jnp.inf).reshape(shape)  # a few infs too
    out = jax.block_until_ready(base_obs_cost(state, x, w=w))
    ref = _reference(state, x, w)
    np.testing.assert_allclose(np.asarray(out), np.asarray(ref), rtol=1e-4, atol=1e-6)


if __name__ == "__main__":
    key = jax.random.PRNGKey(0)
    k0, k1, k2 = jax.random.split(key, 3)

    # Primary small NCHW case consistent with the module's usage.
    _run_case(k0, (2, 4, 16, 16), w=1.0)
    # Ragged flat size: kernel handles the aligned prefix, tiny JAX tail folds the rest.
    _run_case(k1, (2, 3, 17, 29), w=0.5)
    # Multi-block case: exercises the exact 2-way "parallel" (megacore) row split.
    _run_case(k2, (3, 16, 128, 128), w=2.0)

    print("KERNEL_OK")
</pallas_src>

<mosaic_0001>
module attributes {stable_mosaic.version = 11 : i64} {
  func.func @kernel(%arg0: i32, %arg1: i32, %arg2: memref<16x128xf32, #tpu.memory_space<vmem>>, %arg3: memref<16x128xf32, #tpu.memory_space<vmem>>, %arg4: memref<8x128xf32, #tpu.memory_space<vmem>>, %arg5: memref<8x128xf32, #tpu.memory_space<vmem>>) attributes {dimension_semantics = [#tpu.dimension_semantics<parallel>, #tpu.dimension_semantics<arbitrary>], iteration_bounds = array<i64: 1, 1>, scalar_prefetch = 0 : i64, scratch_operands = 0 : i64, tpu.core_type = #tpu.core_type<tc>, window_params = [{transform_indices = @transform_0, window_bounds = array<i64: 16, 128>}, {transform_indices = @transform_1, window_bounds = array<i64: 16, 128>}, {transform_indices = @transform_2, window_bounds = array<i64: 8, 128>}, {transform_indices = @transform_3, window_bounds = array<i64: 8, 128>}]} {
    %c0_i32 = arith.constant 0 : i32
    %0 = arith.cmpi eq, %arg1, %c0_i32 : i32
    %1 = arith.extui %0 : i1 to i32
    %c0_i32_0 = arith.constant 0 : i32
    %2 = arith.cmpi ne, %1, %c0_i32_0 : i32
    scf.if %2 {
      %cst_15 = arith.constant 0.000000e+00 : f32
      %23 = vector.broadcast %cst_15 : f32 to vector<8x128xf32>
      %c0_16 = arith.constant 0 : index
      %c0_17 = arith.constant 0 : index
      %24 = vector.load %arg4[%c0_16, %c0_17] : memref<8x128xf32, #tpu.memory_space<vmem>>, vector<8x128xf32>
      tpu.vector_store %arg4[%c0_16, %c0_17], %23 {strides = array<i32>} : memref<8x128xf32, #tpu.memory_space<vmem>>, vector<8x128xf32>,
      %cst_18 = arith.constant 0.000000e+00 : f32
      %25 = vector.broadcast %cst_18 : f32 to vector<8x128xf32>
      %c0_19 = arith.constant 0 : index
      %c0_20 = arith.constant 0 : index
      %26 = vector.load %arg5[%c0_19, %c0_20] : memref<8x128xf32, #tpu.memory_space<vmem>>, vector<8x128xf32>
      tpu.vector_store %arg5[%c0_19, %c0_20], %25 {strides = array<i32>} : memref<8x128xf32, #tpu.memory_space<vmem>>, vector<8x128xf32>,
    } else {
    }
    %c0 = arith.constant 0 : index
    %c0_1 = arith.constant 0 : index
    %3 = vector.load %arg3[%c0, %c0_1] : memref<16x128xf32, #tpu.memory_space<vmem>>, vector<16x128xf32>
    %c0_2 = arith.constant 0 : index
    %c0_3 = arith.constant 0 : index
    %4 = vector.load %arg2[%c0_2, %c0_3] : memref<16x128xf32, #tpu.memory_space<vmem>>, vector<16x128xf32>
    %5 = tpu.weird %3 : vector<16x128xf32> -> vector<16x128xi1>
    %cst = arith.constant dense<true> : vector<16x128xi1>
    %6 = arith.xori %5, %cst : vector<16x128xi1>
    %7 = arith.subf %4, %3 : vector<16x128xf32>
    %cst_4 = arith.constant 0.000000e+00 : f32
    %8 = vector.broadcast %cst_4 : f32 to vector<16x128xf32>
    %9 = arith.select %6, %7, %8 : vector<16x128xi1>, vector<16x128xf32>
    %10 = arith.mulf %9, %9 : vector<16x128xf32>
    %11 = arith.extui %6 : vector<16x128xi1> to vector<16x128xi32>
    %12 = arith.sitofp %11 : vector<16x128xi32> to vector<16x128xf32>
    %c0_5 = arith.constant 0 : index
    %c0_6 = arith.constant 0 : index
    %13 = vector.load %arg4[%c0_5, %c0_6] : memref<8x128xf32, #tpu.memory_space<vmem>>, vector<8x128xf32>
    %14 = vector.shape_cast %10 : vector<16x128xf32> to vector<2x8x128xf32>
    %cst_7 = arith.constant dense<0.000000e+00> : vector<8x128xf32>
    %15 = vector.multi_reduction <add>, %14, %cst_7 [0] : vector<2x8x128xf32> to vector<8x128xf32>
    %16 = arith.addf %13, %15 : vector<8x128xf32>
    %c0_8 = arith.constant 0 : index
    %c0_9 = arith.constant 0 : index
    %17 = vector.load %arg4[%c0_8, %c0_9] : memref<8x128xf32, #tpu.memory_space<vmem>>, vector<8x128xf32>
    tpu.vector_store %arg4[%c0_8, %c0_9], %16 {strides = array<i32>} : memref<8x128xf32, #tpu.memory_space<vmem>>, vector<8x128xf32>,
    %c0_10 = arith.constant 0 : index
    %c0_11 = arith.constant 0 : index
    %18 = vector.load %arg5[%c0_10, %c0_11] : memref<8x128xf32, #tpu.memory_space<vmem>>, vector<8x128xf32>
    %19 = vector.shape_cast %12 : vector<16x128xf32> to vector<2x8x128xf32>
    %cst_12 = arith.constant dense<0.000000e+00> : vector<8x128xf32>
    %20 = vector.multi_reduction <add>, %19, %cst_12 [0] : vector<2x8x128xf32> to vector<8x128xf32>
    %21 = arith.addf %18, %20 : vector<8x128xf32>
    %c0_13 = arith.constant 0 : index
    %c0_14 = arith.constant 0 : index
    %22 = vector.load %arg5[%c0_13, %c0_14] : memref<8x128xf32, #tpu.memory_space<vmem>>, vector<8x128xf32>
    tpu.vector_store %arg5[%c0_13, %c0_14], %21 {strides = array<i32>} : memref<8x128xf32, #tpu.memory_space<vmem>>, vector<8x128xf32>,
    return
  }
  func.func @transform_0(%arg0: i32, %arg1: i32) -> (i32, i32) {
    %c1_i32 = arith.constant 1 : i32
    %0 = arith.muli %arg0, %c1_i32 : i32
    %1 = arith.addi %0, %arg1 : i32
    %c0_i32 = arith.constant 0 : i32
    %c0_i32_0 = arith.constant 0 : i32
    return %1, %c0_i32 : i32, i32
  }
  func.func @transform_1(%arg0: i32, %arg1: i32) -> (i32, i32) {
    %c1_i32 = arith.constant 1 : i32
    %0 = arith.muli %arg0, %c1_i32 : i32
    %1 = arith.addi %0, %arg1 : i32
    %c0_i32 = arith.constant 0 : i32
    %c0_i32_0 = arith.constant 0 : i32
    return %1, %c0_i32 : i32, i32
  }
  func.func @transform_2(%arg0: i32, %arg1: i32) -> (i32, i32) {
    %c0_i32 = arith.constant 0 : i32
    %c0_i32_0 = arith.constant 0 : i32
    return %arg0, %c0_i32 : i32, i32
  }
  func.func @transform_3(%arg0: i32, %arg1: i32) -> (i32, i32) {
    %c0_i32 = arith.constant 0 : i32
    %c0_i32_0 = arith.constant 0 : i32
    return %arg0, %c0_i32 : i32, i32
  }
}

</mosaic_0001>

<llo_original>
// kernel: tpu_custom_call.1
$region0: #{tpu_custom_call.1}
  #allocation0 [shape = 'u32[]', space=smem, size = 0x4, offset = 0x4, fixed_abs, tag = 'smem constant byte address 0x4 - core index']
  #allocation1 [shape = 'u32[144,128]{1,0:T(1,128)}', space=vmem, size = 0x12000, scoped, tag = 'internal scratch']
  %s0 = inlined_call_operand.hbm [shape: f32[16,128], index: 0, kind: input, shape index: {}]
  %s1 = inlined_call_operand.hbm [shape: f32[16,128], index: 1, kind: input, shape index: {}]
  %s2 = inlined_call_operand.hbm [shape: f32[8,128], index: 2, kind: output, shape index: {0}]
  %s3 = inlined_call_operand.hbm [shape: f32[8,128], index: 3, kind: output, shape index: {1}]
  %4 = xla_tuple %s2, %s3
  %s5 = sld [smem:[#allocation0]]
  $region38: #{tpu_custom_call.1} parent=0
    _
  %s7 = ssub.s32 1, %s5
  %s8 = scalar_select 0, %s7, %s5
  $region1: #{tpu_custom_call.1} parent=0
    #allocation2 [shape = 'u8[8192]{0}', space=vmem, size = 0x2000, scoped, tag = 'input window, operand 0, single buffered']
    #allocation3 [shape = 's32[1]{0}', space=sflag, size = 0x4, scoped, tag = 'scoped memory for tpu_custom_call.1']
    #allocation4 [shape = 's32[1]{0}', space=sflag, size = 0x4, scoped, tag = 'scoped memory for tpu_custom_call.1']
    #allocation5 [shape = 'u8[8192]{0}', space=vmem, size = 0x2000, scoped, tag = 'input window, operand 1, single buffered']
    #allocation6 [shape = 's32[1]{0}', space=sflag, size = 0x4, scoped, tag = 'scoped memory for tpu_custom_call.1']
    #allocation7 [shape = 'u8[4096]{0}', space=vmem, size = 0x1000, scoped, tag = 'output window, operand 0, single buffered']
    #allocation8 [shape = 'u8[4096]{0}', space=vmem, size = 0x1000, scoped, tag = 'output window, operand 1, single buffered']
    #allocation9 [shape = 's32[1]{0}', space=sflag, size = 0x4, scoped, tag = 'scoped memory for tpu_custom_call.1']
    %9 = vsyncpa [#allocation3], 0
    %10 = vsyncpa [#allocation6], 0
    %11 = vsyncpa [#allocation4], 0
    %12 = vsyncpa [#allocation9], 0
    // Predicated region
    $region2: #{tpu_custom_call.1} parent=1 // pred_check
      _
    $region3: #{tpu_custom_call.1} parent=1 // pred_check_branch
      %14 = sbr.rel (0) target = $region5
    $region4: #{tpu_custom_call.1} parent=1 // pred_region
      %s15 = sadd.s32 0, 0
      %s16 = smul.u32 2, %s15
      %s18 = ssub.s32 256, 256
      %19 = vsyncadd [#allocation3], %s18
      %s20 = smul.addr %s16, 128
      %s21 = scalar_lea.hbm %s0, %s20
      %s22 = sshll.u32 [#allocation2], 4
      %s23 = int_to_ptr.vmem [resolvable:$true] %s22
      %28 = dma.hbm_to_vmem [thread:$0]  %s21, 256, %s23, [#allocation3], 128, 128, 8
    $region5: #{tpu_custom_call.1} parent=1 // pred_fallthru
      _
    // Predicated region
    $region6: #{tpu_custom_call.1} parent=1 // pred_check
      _
    $region7: #{tpu_custom_call.1} parent=1 // pred_check_branch
      %30 = sbr.rel (0) target = $region9
    $region8: #{tpu_custom_call.1} parent=1 // pred_region
      %s31 = sadd.s32 0, 0
      %s32 = smul.u32 2, %s31
      %s34 = ssub.s32 256, 256
      %35 = vsyncadd [#allocation6], %s34
      %s36 = smul.addr %s32, 128
      %s37 = scalar_lea.hbm %s1, %s36
      %s38 = sshll.u32 [#allocation5], 4
      %s39 = int_to_ptr.vmem [resolvable:$true] %s38
      %44 = dma.hbm_to_vmem [thread:$0]  %s37, 256, %s39, [#allocation6], 128, 128, 8
    $region9: #{tpu_custom_call.1} parent=1 // pred_fallthru
      _
    // Predicated region
    $region10: #{tpu_custom_call.1} parent=1 // pred_check
      _
    $region11: #{tpu_custom_call.1} parent=1 // pred_check_branch
      %46 = sbr.rel (0) target = $region13
    $region12: #{tpu_custom_call.1} parent=1 // pred_region
      %47 = dma.done [#allocation3], 256
    $region13: #{tpu_custom_call.1} parent=1 // pred_fallthru
      _
    // Predicated region
    $region14: #{tpu_custom_call.1} parent=1 // pred_check
      _
    $region15: #{tpu_custom_call.1} parent=1 // pred_check_branch
      %49 = sbr.rel (0) target = $region17
    $region16: #{tpu_custom_call.1} parent=1 // pred_region
      %50 = dma.done [#allocation6], 256
    $region17: #{tpu_custom_call.1} parent=1 // pred_fallthru
      _
    %s51 = sadd.s32 0, 0
    %s52 = smul.u32 2, %s51
    %s53 = sadd.s32 0, 0
    %s54 = smul.u32 2, %s53
    %p55 = scmp.eq.s32.totalorder 0, 0
    // Predicated region
    $region18: #{tpu_custom_call.1} parent=1 // pred_check
      %p56 = pneg %p55
    $region19: #{tpu_custom_call.1} parent=1 // pred_check_branch
      %58 = sbr.rel (%p56) target = $region21
    $region20: #{tpu_custom_call.1} parent=1 // pred_region
      %59 = vst [vmem:[#allocation7] sm:$0xff] 0.0
      %60 = vst [vmem:[#allocation8] sm:$0xff] 0.0
    $region21: #{tpu_custom_call.1} parent=1 // pred_fallthru
      _
    %v61 = vld [vmem:[#allocation5] sm:$0xff]
    %v62 = vld [vmem:[#allocation5 + $0x8] sm:$0xff]
    %v63 = vld [vmem:[#allocation2] sm:$0xff]
    %v64 = vld [vmem:[#allocation2 + $0x8] sm:$0xff]
    %vm65 = vweird.f32 %v61
    %vm66 = vweird.f32 %v62
    %vm67 = vmxor %vm65, 1
    %vm68 = vmxor %vm66, 1
    %v69 = vsub.f32 %v63, %v61
    %v70 = vsub.f32 %v64, %v62
    %v71 = vsel %vm67, %v69, 0.0
    %v72 = vsel %vm68, %v70, 0.0
    %v73 = vmul.f32 %v71, %v71
    %v74 = vmul.f32 %v72, %v72
    %v75 = vsel %vm67, 1, 0
    %v76 = vsel %vm68, 1, 0
    %v77 = vcvt.s32.f32 %v75
    %v78 = vcvt.s32.f32 %v76
    %v79 = vld [vmem:[#allocation7] sm:$0xff]
    %v80 = vadd.f32 %v73, %v74
    %v81 = vadd.f32 %v79, %v80
    %82 = vst [vmem:[#allocation7] sm:$0xff] %v81
    %v83 = vld [vmem:[#allocation8] sm:$0xff]
    %v84 = vadd.f32 %v77, %v78
    %v85 = vadd.f32 %v83, %v84
    %86 = vst [vmem:[#allocation8] sm:$0xff] %v85
    // Predicated region
    $region22: #{tpu_custom_call.1} parent=1 // pred_check
      _
    $region23: #{tpu_custom_call.1} parent=1 // pred_check_branch
      %88 = sbr.rel (0) target = $region25
    $region24: #{tpu_custom_call.1} parent=1 // pred_region
      %s90 = ssub.s32 128, 128
      %91 = vsyncadd [#allocation4], %s90
      %s93 = sshll.u32 [#allocation7], 4
      %s94 = int_to_ptr.vmem [resolvable:$true] %s93
      %96 = dma.vmem_to_hbm [thread:$0]  %s94, 128, %s2, [#allocation4]
    $region25: #{tpu_custom_call.1} parent=1 // pred_fallthru
      _
    // Predicated region
    $region26: #{tpu_custom_call.1} parent=1 // pred_check
      _
    $region27: #{tpu_custom_call.1} parent=1 // pred_check_branch
      %98 = sbr.rel (0) target = $region29
    $region28: #{tpu_custom_call.1} parent=1 // pred_region
      %s100 = ssub.s32 128, 128
      %101 = vsyncadd [#allocation9], %s100
      %s103 = sshll.u32 [#allocation8], 4
      %s104 = int_to_ptr.vmem [resolvable:$true] %s103
      %106 = dma.vmem_to_hbm [thread:$0]  %s104, 128, %s3, [#allocation9]
    $region29: #{tpu_custom_call.1} parent=1 // pred_fallthru
      _
    // Predicated region
    $region30: #{tpu_custom_call.1} parent=1 // pred_check
      _
    $region31: #{tpu_custom_call.1} parent=1 // pred_check_branch
      %108 = sbr.rel (0) target = $region33
    $region32: #{tpu_custom_call.1} parent=1 // pred_region
      %109 = dma.done [#allocation4], 128
    $region33: #{tpu_custom_call.1} parent=1 // pred_fallthru
      _
    // Predicated region
    $region34: #{tpu_custom_call.1} parent=1 // pred_check
      _
    $region35: #{tpu_custom_call.1} parent=1 // pred_check_branch
      %111 = sbr.rel (0) target = $region37
    $region36: #{tpu_custom_call.1} parent=1 // pred_region
      %112 = dma.done [#allocation9], 128
    $region37: #{tpu_custom_call.1} parent=1 // pred_fallthru
      _
    %113 = vsyncpa [#allocation3], 1
    %114 = vsyncpa [#allocation6], 1
    %115 = vsyncpa [#allocation4], 1
    %116 = vsyncpa [#allocation9], 1

</llo_original>
